<compile_context>
chip_gen: v6e
topology: v6e:2x2x1
jax: 0.10.0
libtpu: 0.0.40
codegen_flags: <defaults>
</compile_context>

<pallas_src>
import jax
import jax.numpy as jnp
from jax.experimental import pallas as pl
from jax.experimental.pallas import tpu as pltpu


def _round_up(x: int, m: int) -> int:
    return ((x + m - 1) // m) * m


def _vmem_capacity_bytes() -> int:
    """Per-core VMEM capacity; conservative (v7x = 64 MiB) fallback if query fails."""
    try:
        return int(pltpu.get_tpu_info().vmem_capacity_bytes)
    except Exception:
        return 64 * 1024 * 1024


def _fast_rcnn_fused_kernel(x_ref, w_ref, aux_ref, out_ref):
    # x tile in f32: (TN, D)
    x = x_ref[...]

    # Row-wise L2 norm in f32 (XLU reduce), reciprocal on the EUP (approx, free slot).
    ssq = jnp.sum(x * x, axis=1, keepdims=True)                 # (TN, 1)
    inv = pl.reciprocal(jnp.sqrt(ssq) + 1e-5, approx=True)      # (TN, 1)

    # One fused MXU matmul in f32 (weights pre-normalized & pre-transposed in wrapper).
    acc = jnp.dot(x, w_ref[...], preferred_element_type=jnp.float32)   # (TN, Pout)

    # Precomputed column rows (no per-step iota/where):
    #   mask20 = 20 on score columns, 0 elsewhere
    #   keep   = 1 on box-delta columns, 0 elsewhere (also 0 on padding -> clean zeros)
    #   bias   = [20*b_cls, b_box, 0...]
    mask20 = aux_ref[0:1, :]                                    # (1, Pout)
    keep = aux_ref[1:2, :]                                      # (1, Pout)
    bias = aux_ref[2:3, :]                                      # (1, Pout)

    scale = inv * mask20 + keep                                 # (TN, Pout)
    out_ref[...] = (acc * scale + bias).astype(out_ref.dtype)   # f32 math, bf16 store


def prepare_fast_rcnn_params(w_cls, b_cls, w_box, b_box):
    """Fold the constant-parameter work (normalize / concat / pad / transpose / bias /
    column masks) into kernel-ready arrays.  Call once at model init and cache."""
    c, d = w_cls.shape
    b = w_box.shape[0]
    pout = _round_up(c + b, 128)                                # lane-dense output width

    w_cls_f = w_cls.astype(jnp.float32)
    w_box_f = w_box.astype(jnp.float32)
    wc_norm = w_cls_f / (jnp.linalg.norm(w_cls_f, axis=1, keepdims=True) + 1e-5)
    w_cat = jnp.concatenate([wc_norm, w_box_f], axis=0)         # (C+B, D)
    w_pad_t = jnp.zeros((d, pout), jnp.float32).at[:, : c + b].set(w_cat.T)  # (D, Pout) f32

    col = jnp.arange(pout)
    mask20 = jnp.where(col < c, 20.0, 0.0).astype(jnp.float32)
    keep = jnp.where((col >= c) & (col < c + b), 1.0, 0.0).astype(jnp.float32)
    bias = jnp.zeros((pout,), jnp.float32)
    bias = bias.at[:c].set(20.0 * b_cls.astype(jnp.float32))    # 20x folded into cls bias
    bias = bias.at[c:c + b].set(b_box.astype(jnp.float32))
    aux = jnp.stack([mask20, keep, bias], axis=0)               # (3, Pout)

    return {"w": w_pad_t, "aux": aux, "num_cls": c, "num_box": b, "pout": pout, "d": d}


def fast_rcnn_forward_prepared(x, params, *, tn=None):
    """Run the fused forward with pre-prepared parameters. Returns (scores, deltas)."""
    if x.ndim > 2:
        x = x.reshape(x.shape[0], -1)
    x = x.astype(jnp.float32)
    n, d = x.shape
    assert d == params["d"], f"feature dim mismatch: {d} vs {params['d']}"
    pout, c, b = params["pout"], params["num_cls"], params["num_box"]

    # ---- N tiling: as big as the VMEM budget allows (kernel is HBM bound) ----
    cap = _vmem_capacity_bytes()
    budget = int(cap * 0.70)                                    # headroom for compiler scratch
    resident = 2 * d * pout * 4 + 2 * 8 * pout * 4              # dbl-buffered weight + aux
    per_row = 2 * d * 4 + 2 * pout * 2 + pout * 4               # dbl-buf f32 x, dbl-buf bf16 out, f32 acc
    tn_budget = max(16, ((budget - resident) // per_row) // 16 * 16)

    if tn is None:
        tn = min(tn_budget, 8192, _round_up(n, 16))
        if n >= 1024:
            # Keep >= 2 grid steps so v7x's second TensorCore gets a share of the rows.
            tn = min(tn, _round_up(-(-n // 2), 16))
    else:
        tn = max(16, _round_up(int(tn), 16))                    # enforce (8,128)-safe tiles
        tn = min(tn, tn_budget)

    n_pad = _round_up(n, tn)
    if n_pad != n:
        x = jnp.pad(x, ((0, n_pad - n), (0, 0)))
    grid = (n_pad // tn,)

    vmem_limit = int(min(cap * 3 // 4,
                         max(resident + tn * per_row + (2 << 20), 8 << 20)))

    out = pl.pallas_call(
        _fast_rcnn_fused_kernel,
        out_shape=jax.ShapeDtypeStruct((n_pad, pout), jnp.bfloat16),
        grid=grid,
        in_specs=[
            pl.BlockSpec((tn, d), lambda i: (i, 0)),       # x tile streamed over N
            pl.BlockSpec((d, pout), lambda i: (0, 0)),     # fused f32 weight, resident
            pl.BlockSpec((3, pout), lambda i: (0, 0)),     # [mask20; keep; bias], resident
        ],
        out_specs=pl.BlockSpec((tn, pout), lambda i: (i, 0)),
        compiler_params=pltpu.CompilerParams(
            dimension_semantics=("parallel",),             # N axis independent across steps
            vmem_limit_bytes=vmem_limit),
    )(x, params["w"], params["aux"])

    # Slice out the real columns (cheap; ideally consumed fused inside the same jit).
    scores = out[:n, :c].astype(jnp.float32)
    deltas = out[:n, c:c + b].astype(jnp.float32)
    return scores, deltas


def fast_rcnn_output_layers_forward(x, w_cls, b_cls, w_box, b_box, *, tn=None):
    """Convenience wrapper matching the module: prepares params then runs the kernel.
    In a real model, call prepare_fast_rcnn_params() once at init and cache it."""
    params = prepare_fast_rcnn_params(w_cls, b_cls, w_box, b_box)
    return fast_rcnn_forward_prepared(x, params, tn=tn)


def _reference_forward(x, w_cls, b_cls, w_box, b_box):
    if x.ndim > 2:
        x = x.reshape(x.shape[0], -1)
    x = x.astype(jnp.float32)
    xn = x / (jnp.linalg.norm(x, axis=1, keepdims=True) + 1e-5)
    wcn = w_cls / (jnp.linalg.norm(w_cls, axis=1, keepdims=True) + 1e-5)
    scores = 20.0 * (xn @ wcn.T + b_cls)
    deltas = x @ w_box.T + b_box
    return scores, deltas


if __name__ == "__main__":
    # Module config: flattened input_size D = 256, num_classes = 7,
    # cls_agnostic_bbox_reg = True, box_dim = 4 (len(Box2BoxTransform.weights)).
    num_classes = 7
    box_dim = 4
    N, C, H, W = 8, 4, 8, 8          # per-region features, flattened D = 256
    D = C * H * W

    key = jax.random.PRNGKey(0)
    kx, kwc, kwb = jax.random.split(key, 3)

    x = jax.random.normal(kx, (N, C, H, W), dtype=jnp.float32)
    # nn.init.normal_(std=0.01 / 0.001), biases = 0 as in the module.
    w_cls = 0.01 * jax.random.normal(kwc, (num_classes + 1, D), dtype=jnp.float32)
    b_cls = jnp.zeros((num_classes + 1,), dtype=jnp.float32)
    w_box = 0.001 * jax.random.normal(kwb, (box_dim, D), dtype=jnp.float32)
    b_box = jnp.zeros((box_dim,), dtype=jnp.float32)

    # "Init-time" parameter preparation (cache in a real model), then the fused forward.
    params = prepare_fast_rcnn_params(w_cls, b_cls, w_box, b_box)
    scores, deltas = fast_rcnn_forward_prepared(x, params)
    jax.block_until_ready((scores, deltas))

    ref_scores, ref_deltas = _reference_forward(x, w_cls, b_cls, w_box, b_box)
    assert scores.shape == (N, num_classes + 1)
    assert deltas.shape == (N, box_dim)
    # f32 matmul + approx reciprocal + bf16 store -> comfortably within 1e-2 tolerances.
    assert jnp.allclose(scores, ref_scores, atol=1e-2, rtol=1e-2)
    assert jnp.allclose(deltas, ref_deltas, atol=1e-2, rtol=1e-2)

    # TODO(synk): losses/inference (cross-entropy, smooth-L1, NMS, box decode) are not
    # part of forward() and are left out of the kernel.
    print("KERNEL_OK")
</pallas_src>

<mosaic_0001>
module attributes {stable_mosaic.version = 11 : i64} {
  func.func @_fast_rcnn_fused_kernel(%arg0: i32, %arg1: memref<16x256xf32, #tpu.memory_space<vmem>>, %arg2: memref<256x128xf32, #tpu.memory_space<vmem>>, %arg3: memref<3x128xf32, #tpu.memory_space<vmem>>, %arg4: memref<16x128xbf16, #tpu.memory_space<vmem>>) attributes {dimension_semantics = [#tpu.dimension_semantics<parallel>], iteration_bounds = array<i64: 1>, scalar_prefetch = 0 : i64, scratch_operands = 0 : i64, tpu.core_type = #tpu.core_type<tc>, window_params = [{transform_indices = @transform_0, window_bounds = array<i64: 16, 256>}, {pipeline_mode = #tpu.pipeline_mode<synchronous>, transform_indices = @transform_1, window_bounds = array<i64: 256, 128>}, {pipeline_mode = #tpu.pipeline_mode<synchronous>, transform_indices = @transform_2, window_bounds = array<i64: 3, 128>}, {transform_indices = @transform_3, window_bounds = array<i64: 16, 128>}]} {
    %c0 = arith.constant 0 : index
    %c0_0 = arith.constant 0 : index
    %0 = vector.load %arg1[%c0, %c0_0] : memref<16x256xf32, #tpu.memory_space<vmem>>, vector<16x256xf32>
    %1 = arith.mulf %0, %0 : vector<16x256xf32>
    %cst = arith.constant dense<0.000000e+00> : vector<16xf32>
    %2 = vector.multi_reduction <add>, %1, %cst [1] : vector<16x256xf32> to vector<16xf32>
    %3 = vector.shape_cast %2 : vector<16xf32> to vector<16x1xf32>
    %4 = math.sqrt %3 : vector<16x1xf32>
    %cst_1 = arith.constant 9.99999974E-6 : f32
    %5 = vector.broadcast %cst_1 : f32 to vector<16x1xf32>
    %6 = arith.addf %4, %5 : vector<16x1xf32>
    %7 = tpu.reciprocal %6 {approx = true} : vector<16x1xf32> -> vector<16x1xf32>
    %c0_2 = arith.constant 0 : index
    %c0_3 = arith.constant 0 : index
    %8 = vector.load %arg2[%c0_2, %c0_3] : memref<256x128xf32, #tpu.memory_space<vmem>>, vector<256x128xf32>
    %cst_4 = arith.constant dense<0.000000e+00> : vector<16x128xf32>
    %9 = tpu.matmul %0, %8, %cst_4 {dimension_numbers = #tpu.dot_dimension_numbers<[1], [0], [0], [1], [0, 0, 1, 1], [], []>} : vector<16x256xf32>, vector<256x128xf32>, vector<16x128xf32> -> vector<16x128xf32>
    %c0_5 = arith.constant 0 : index
    %c0_6 = arith.constant 0 : index
    %10 = vector.load %arg3[%c0_5, %c0_6] : memref<3x128xf32, #tpu.memory_space<vmem>>, vector<1x128xf32>
    %c1 = arith.constant 1 : index
    %c0_7 = arith.constant 0 : index
    %11 = vector.load %arg3[%c1, %c0_7] : memref<3x128xf32, #tpu.memory_space<vmem>>, vector<1x128xf32>
    %c2 = arith.constant 2 : index
    %c0_8 = arith.constant 0 : index
    %12 = vector.load %arg3[%c2, %c0_8] : memref<3x128xf32, #tpu.memory_space<vmem>>, vector<1x128xf32>
    %13 = vector.broadcast %7 : vector<16x1xf32> to vector<16x128xf32>
    %14 = vector.broadcast %10 : vector<1x128xf32> to vector<16x128xf32>
    %15 = arith.mulf %13, %14 : vector<16x128xf32>
    %16 = vector.broadcast %11 : vector<1x128xf32> to vector<16x128xf32>
    %17 = arith.addf %15, %16 : vector<16x128xf32>
    %18 = arith.mulf %9, %17 : vector<16x128xf32>
    %19 = vector.broadcast %12 : vector<1x128xf32> to vector<16x128xf32>
    %20 = arith.addf %18, %19 : vector<16x128xf32>
    %21 = arith.truncf %20 : vector<16x128xf32> to vector<16x128xbf16>
    %c0_9 = arith.constant 0 : index
    %c0_10 = arith.constant 0 : index
    %22 = vector.load %arg4[%c0_9, %c0_10] : memref<16x128xbf16, #tpu.memory_space<vmem>>, vector<16x128xbf16>
    tpu.vector_store %arg4[%c0_9, %c0_10], %21 {strides = array<i32>} : memref<16x128xbf16, #tpu.memory_space<vmem>>, vector<16x128xbf16>,
    return
  }
  func.func @transform_0(%arg0: i32) -> (i32, i32) {
    %c0_i32 = arith.constant 0 : i32
    %c0_i32_0 = arith.constant 0 : i32
    return %arg0, %c0_i32 : i32, i32
  }
  func.func @transform_1(%arg0: i32) -> (i32, i32) {
    %c0_i32 = arith.constant 0 : i32
    %c0_i32_0 = arith.constant 0 : i32
    %c0_i32_1 = arith.constant 0 : i32
    return %c0_i32, %c0_i32_0 : i32, i32
  }
  func.func @transform_2(%arg0: i32) -> (i32, i32) {
    %c0_i32 = arith.constant 0 : i32
    %c0_i32_0 = arith.constant 0 : i32
    %c0_i32_1 = arith.constant 0 : i32
    return %c0_i32, %c0_i32_0 : i32, i32
  }
  func.func @transform_3(%arg0: i32) -> (i32, i32) {
    %c0_i32 = arith.constant 0 : i32
    %c0_i32_0 = arith.constant 0 : i32
    return %arg0, %c0_i32 : i32, i32
  }
}

</mosaic_0001>

<llo_original>
// kernel: tpu_custom_call.1
$region0: #{tpu_custom_call.1}
  #allocation0 [shape = 'u32[]', space=smem, size = 0x4, offset = 0x4, fixed_abs, tag = 'smem constant byte address 0x4 - core index']
  #allocation1 [shape = 'u32[144,128]{1,0:T(1,128)}', space=vmem, size = 0x12000, scoped, tag = 'internal scratch']
  %s0 = inlined_call_operand.hbm [shape: f32[16,256], index: 0, kind: input, shape index: {}]
  %s1 = inlined_call_operand.hbm [shape: f32[256,128], index: 1, kind: input, shape index: {}]
  %s2 = inlined_call_operand.hbm [shape: f32[3,128], index: 2, kind: input, shape index: {}]
  %s3 = inlined_call_operand.hbm [shape: bf16[16,128], index: 3, kind: output, shape index: {}]
  %s4 = sld [smem:[#allocation0]]
  $region34: #{tpu_custom_call.1} parent=0
    _
  %s6 = ssub.s32 1, %s4
  %s7 = scalar_select 0, %s6, %s4
  $region1: #{tpu_custom_call.1} parent=0
    #allocation2 [shape = 'u8[16384]{0}', space=vmem, size = 0x4000, scoped, tag = 'input window, operand 0, single buffered']
    #allocation3 [shape = 's32[1]{0}', space=sflag, size = 0x4, scoped, tag = 'scoped memory for tpu_custom_call.1']
    #allocation4 [shape = 's32[1]{0}', space=sflag, size = 0x4, scoped, tag = 'scoped memory for tpu_custom_call.1']
    #allocation5 [shape = 'u8[131072]{0}', space=vmem, size = 0x20000, scoped, tag = 'input window, operand 1, single buffered']
    #allocation6 [shape = 's32[1]{0}', space=sflag, size = 0x4, scoped, tag = 'scoped memory for tpu_custom_call.1']
    #allocation7 [shape = 'u8[2048]{0}', space=vmem, size = 0x800, scoped, tag = 'input window, operand 2, single buffered']
    #allocation8 [shape = 'u8[4096]{0}', space=vmem, size = 0x1000, scoped, tag = 'output window, operand 0, single buffered']
    %8 = vsyncpa [#allocation3], 0
    %9 = vsyncpa [#allocation6], 0
    %10 = vsyncpa [#allocation4], 0
    // Predicated region
    $region2: #{tpu_custom_call.1} parent=1 // pred_check
      _
    $region3: #{tpu_custom_call.1} parent=1 // pred_check_branch
      %12 = sbr.rel (0) target = $region5
    $region4: #{tpu_custom_call.1} parent=1 // pred_region
      %s14 = ssub.s32 512, 512
      %15 = vsyncadd [#allocation3], %s14
      %s16 = sshll.u32 [#allocation2], 4
      %s17 = int_to_ptr.vmem [resolvable:$true] %s16
      %22 = dma.hbm_to_vmem [thread:$0]  %s0, 512, %s17, [#allocation3], 256, 256, 16
    $region5: #{tpu_custom_call.1} parent=1 // pred_fallthru
      _
    // Predicated region
    $region6: #{tpu_custom_call.1} parent=1 // pred_check
      _
    $region7: #{tpu_custom_call.1} parent=1 // pred_check_branch
      %24 = sbr.rel (0) target = $region9
    $region8: #{tpu_custom_call.1} parent=1 // pred_region
      %s26 = ssub.s32 4096, 4096
      %27 = vsyncadd [#allocation6], %s26
      %s28 = sshll.u32 [#allocation5], 4
      %s29 = int_to_ptr.vmem [resolvable:$true] %s28
      %34 = dma.hbm_to_vmem [thread:$0]  %s1, 4096, %s29, [#allocation6], 128, 128, 8
    $region9: #{tpu_custom_call.1} parent=1 // pred_fallthru
      _
    // Predicated region
    $region10: #{tpu_custom_call.1} parent=1 // pred_check
      _
    $region11: #{tpu_custom_call.1} parent=1 // pred_check_branch
      %36 = sbr.rel (0) target = $region13
    $region12: #{tpu_custom_call.1} parent=1 // pred_region
      %s38 = ssub.s32 64, 64
      %39 = vsyncadd [#allocation6], %s38
      %s41 = sshll.u32 [#allocation7], 4
      %s42 = int_to_ptr.vmem [resolvable:$true] %s41
      %44 = dma.hbm_to_vmem [thread:$0]  %s2, 64, %s42, [#allocation6]
    $region13: #{tpu_custom_call.1} parent=1 // pred_fallthru
      _
    // Predicated region
    $region14: #{tpu_custom_call.1} parent=1 // pred_check
      _
    $region15: #{tpu_custom_call.1} parent=1 // pred_check_branch
      %46 = sbr.rel (0) target = $region17
    $region16: #{tpu_custom_call.1} parent=1 // pred_region
      %47 = dma.done [#allocation3], 512
    $region17: #{tpu_custom_call.1} parent=1 // pred_fallthru
      _
    // Predicated region
    $region18: #{tpu_custom_call.1} parent=1 // pred_check
      _
    $region19: #{tpu_custom_call.1} parent=1 // pred_check_branch
      %49 = sbr.rel (0) target = $region21
    $region20: #{tpu_custom_call.1} parent=1 // pred_region
      %50 = dma.done [#allocation6], 4096
    $region21: #{tpu_custom_call.1} parent=1 // pred_fallthru
      _
    // Predicated region
    $region22: #{tpu_custom_call.1} parent=1 // pred_check
      _
    $region23: #{tpu_custom_call.1} parent=1 // pred_check_branch
      %52 = sbr.rel (0) target = $region25
    $region24: #{tpu_custom_call.1} parent=1 // pred_region
      %53 = dma.done [#allocation6], 64
    $region25: #{tpu_custom_call.1} parent=1 // pred_fallthru
      _
    %v54 = vld [vmem:[#allocation2] sm:$0xff]
    %v55 = vld [vmem:[#allocation2 + $0x8] sm:$0xff]
    %v56 = vld [vmem:[#allocation2 + $0x10] sm:$0xff]
    %v57 = vld [vmem:[#allocation2 + $0x18] sm:$0xff]
    %v58 = vmul.f32 %v54, %v54
    %v59 = vmul.f32 %v55, %v55
    %v60 = vmul.f32 %v56, %v56
    %v61 = vmul.f32 %v57, %v57
    %v62 = vadd.f32 %v58, %v59
    %63 = vadd.xlane.f32.xlu0 %v62
    %v64 = vpop.xlane.xlu0 %63
    %v65 = vadd.f32 %v60, %v61
    %66 = vadd.xlane.f32.xlu0 %v65
    %v67 = vpop.xlane.xlu0 %66
    %v68 = vrsqrt.pop %v64
    %v69 = vmul.f32 %v64, %v68
    %vm70 = vcmp.eq.f32.partialorder %v64, inf
    %v71 = vsel %vm70, %v64, %v69
    %vm72 = vcmp.eq.f32.partialorder %v64, 0.0
    %v73 = vand.u32 %v64, 2147483648
    %v74 = vsel %vm72, %v73, %v71
    %v75 = vrsqrt.pop %v67
    %v76 = vmul.f32 %v67, %v75
    %vm77 = vcmp.eq.f32.partialorder %v67, inf
    %v78 = vsel %vm77, %v67, %v76
    %vm79 = vcmp.eq.f32.partialorder %v67, 0.0
    %v80 = vand.u32 %v67, 2147483648
    %v81 = vsel %vm79, %v80, %v78
    %v82 = vadd.f32 %v74, 1e-05
    %v83 = vadd.f32 %v81, 1e-05
    %v84 = vrcp.pop %v82
    %v85 = vrcp.pop %v83
    %v86 = vld [vmem:[#allocation5] sm:$0xff]
    %v87 = vld [vmem:[#allocation5 + $0x8] sm:$0xff]
    %v88 = vld [vmem:[#allocation5 + $0x10] sm:$0xff]
    %v89 = vld [vmem:[#allocation5 + $0x18] sm:$0xff]
    %v90 = vld [vmem:[#allocation5 + $0x20] sm:$0xff]
    %v91 = vld [vmem:[#allocation5 + $0x28] sm:$0xff]
    %v92 = vld [vmem:[#allocation5 + $0x30] sm:$0xff]
    %v93 = vld [vmem:[#allocation5 + $0x38] sm:$0xff]
    %v94 = vld [vmem:[#allocation5 + $0x40] sm:$0xff]
    %v95 = vld [vmem:[#allocation5 + $0x48] sm:$0xff]
    %v96 = vld [vmem:[#allocation5 + $0x50] sm:$0xff]
    %v97 = vld [vmem:[#allocation5 + $0x58] sm:$0xff]
    %v98 = vld [vmem:[#allocation5 + $0x60] sm:$0xff]
    %v99 = vld [vmem:[#allocation5 + $0x68] sm:$0xff]
    %v100 = vld [vmem:[#allocation5 + $0x70] sm:$0xff]
    %v101 = vld [vmem:[#allocation5 + $0x78] sm:$0xff]
    %v102 = vld [vmem:[#allocation5 + $0x80] sm:$0xff]
    %v103 = vld [vmem:[#allocation5 + $0x88] sm:$0xff]
    %v104 = vld [vmem:[#allocation5 + $0x90] sm:$0xff]
    %v105 = vld [vmem:[#allocation5 + $0x98] sm:$0xff]
    %v106 = vld [vmem:[#allocation5 + $0xa0] sm:$0xff]
    %v107 = vld [vmem:[#allocation5 + $0xa8] sm:$0xff]
    %v108 = vld [vmem:[#allocation5 + $0xb0] sm:$0xff]
    %v109 = vld [vmem:[#allocation5 + $0xb8] sm:$0xff]
    %v110 = vld [vmem:[#allocation5 + $0xc0] sm:$0xff]
    %v111 = vld [vmem:[#allocation5 + $0xc8] sm:$0xff]
    %v112 = vld [vmem:[#allocation5 + $0xd0] sm:$0xff]
    %v113 = vld [vmem:[#allocation5 + $0xd8] sm:$0xff]
    %v114 = vld [vmem:[#allocation5 + $0xe0] sm:$0xff]
    %v115 = vld [vmem:[#allocation5 + $0xe8] sm:$0xff]
    %v116 = vld [vmem:[#allocation5 + $0xf0] sm:$0xff]
    %v117 = vld [vmem:[#allocation5 + $0xf8] sm:$0xff]
    %118 = vmatprep.subr.mxu0 0.0
    %119 = vmatpush1.msra.mxu0 %v101
    %120 = vmatprep.subr.mxu0 0.0
    %121 = vmatpush1.msra.mxu0 %v100
    %122 = vmatprep.subr.mxu0 0.0
    %123 = vmatpush1.msra.mxu0 %v99
    %124 = vmatprep.subr.mxu0 0.0
    %125 = vmatpush1.msra.mxu0 %v98
    %126 = vmatprep.subr.mxu0 0.0
    %127 = vmatpush1.msra.mxu0 %v97
    %128 = vmatprep.subr.mxu0 0.0
    %129 = vmatpush1.msra.mxu0 %v96
    %130 = vmatprep.subr.mxu0 0.0
    %131 = vmatpush1.msra.mxu0 %v95
    %132 = vmatprep.subr.mxu0 0.0
    %133 = vmatpush1.msra.mxu0 %v94
    %134 = vmatprep.subr.mxu0 0.0
    %135 = vmatpush1.msra.mxu0 %v93
    %136 = vmatprep.subr.mxu0 0.0
    %137 = vmatpush1.msra.mxu0 %v92
    %138 = vmatprep.subr.mxu0 0.0
    %139 = vmatpush1.msra.mxu0 %v91
    %140 = vmatprep.subr.mxu0 0.0
    %141 = vmatpush1.msra.mxu0 %v90
    %142 = vmatprep.subr.mxu0 0.0
    %143 = vmatpush1.msra.mxu0 %v89
    %144 = vmatprep.subr.mxu0 0.0
    %145 = vmatpush1.msra.mxu0 %v88
    %146 = vmatprep.subr.mxu0 0.0
    %147 = vmatpush1.msra.mxu0 %v87
    %148 = vmatprep.subr.mxu0 0.0
    %149 = vmatpush1.msra.mxu0 %v86
    %150 = vmatprep.subr.mxu0 0.0
    %151 = vmatpush2.msra.mxu0 %v117
    %152 = vmatprep.subr.mxu0 0.0
    %153 = vmatpush2.msra.mxu0 %v116
    %154 = vmatprep.subr.mxu0 0.0
    %155 = vmatpush2.msra.mxu0 %v115
    %156 = vmatprep.subr.mxu0 0.0
    %157 = vmatpush2.msra.mxu0 %v114
    %158 = vmatprep.subr.mxu0 0.0
    %159 = vmatpush2.msra.mxu0 %v113
    %160 = vmatprep.subr.mxu0 0.0
    %161 = vmatpush2.msra.mxu0 %v112
    %162 = vmatprep.subr.mxu0 0.0
    %163 = vmatpush2.msra.mxu0 %v111
    %164 = vmatprep.subr.mxu0 0.0
    %165 = vmatpush2.msra.mxu0 %v110
    %166 = vmatprep.subr.mxu0 0.0
    %167 = vmatpush2.msra.mxu0 %v109
    %168 = vmatprep.subr.mxu0 0.0
    %169 = vmatpush2.msra.mxu0 %v108
    %170 = vmatprep.subr.mxu0 0.0
    %171 = vmatpush2.msra.mxu0 %v107
    %172 = vmatprep.subr.mxu0 0.0
    %173 = vmatpush2.msra.mxu0 %v106
    %174 = vmatprep.subr.mxu0 0.0
    %175 = vmatpush2.msra.mxu0 %v105
    %176 = vmatprep.subr.mxu0 0.0
    %177 = vmatpush2.msra.mxu0 %v104
    %178 = vmatprep.subr.mxu0 0.0
    %179 = vmatpush2.msra.mxu0 %v103
    %180 = vmatprep.subr.mxu0 0.0
    %181 = vmatpush2.msra.mxu0 %v102
    %182 = vmatprep.mubr.f32.mxu0 %v55
    %183 = vmatmul.mubr.f32.gmra.mxu0 %v54
    %v184 = vpop.f32.mrf.mxu0
    %v185 = vadd.f32 0.0, %v184
    %v186 = vpop.f32.mrf.mxu0
    %187 = vmatprep.mubr.f32.mxu0 %v57
    %188 = vmatmul.mubr.f32.gmra.mxu0 %v56
    %v189 = vpop.f32.mrf.mxu0
    %v190 = vadd.f32 0.0, %v189
    %v191 = vpop.f32.mrf.mxu0
    %192 = vdwg.mxu0
    %v193 = vld [vmem:[#allocation7] sm:$0x1]
    %v194 = vld [vmem:[#allocation7 + $0x1] sm:$0x1]
    %v195 = vld [vmem:[#allocation7 + $0x2] sm:$0x1]
    %v196 = vlaneseq
    %v197 = vshrl.u32 %v196, 7
    %v198 = vsub.s32 0, %v197
    %v199 = vrot.slane %v193, %v198
    %v200 = vmul.f32 %v84, %v199
    %v201 = vmul.f32 %v85, %v199
    %v202 = vlaneseq
    %v203 = vshrl.u32 %v202, 7
    %v204 = vsub.s32 0, %v203
    %v205 = vrot.slane %v194, %v204
    %v206 = vadd.f32 %v200, %v205
    %v207 = vadd.f32 %v201, %v205
    %v208 = vmul.f32 %v185, %v206
    %v209 = vmul.f32 %v190, %v207
    %v210 = vlaneseq
    %v211 = vshrl.u32 %v210, 7
    %v212 = vsub.s32 0, %v211
    %v213 = vrot.slane %v195, %v212
    %v214 = vadd.f32 %v208, %v213
    %v215 = vadd.f32 %v209, %v213
    %v216 = vpack.c.bf16 %v215, %v214
    %v218 = vunpack.c.l.b16 %v216
    %v219 = vunpack.c.h.b16 %v216
    %v220 = vpack.c.b16 %v218, %v218
    %v221 = vpack.c.b16 %v219, %v219
    %224 = vst [vmem:[#allocation8] sm:$0xf] %v220
    %225 = vst [vmem:[#allocation8 + $0x4] sm:$0xf] %v221
    // Predicated region
    $region26: #{tpu_custom_call.1} parent=1 // pred_check
      _
    $region27: #{tpu_custom_call.1} parent=1 // pred_check_branch
      %227 = sbr.rel (0) target = $region29
    $region28: #{tpu_custom_call.1} parent=1 // pred_region
      %s229 = ssub.s32 128, 128
      %230 = vsyncadd [#allocation4], %s229
      %s231 = sshll.u32 [#allocation8], 4
      %s232 = int_to_ptr.vmem [resolvable:$true] %s231
      %237 = dma.vmem_to_hbm [thread:$0]  %s232, 128, %s3, [#allocation4], 64, 64, 4
    $region29: #{tpu_custom_call.1} parent=1 // pred_fallthru
      _
    // Predicated region
    $region30: #{tpu_custom_call.1} parent=1 // pred_check
      _
    $region31: #{tpu_custom_call.1} parent=1 // pred_check_branch
      %239 = sbr.rel (0) target = $region33
    $region32: #{tpu_custom_call.1} parent=1 // pred_region
      %240 = dma.done [#allocation4], 128
    $region33: #{tpu_custom_call.1} parent=1 // pred_fallthru
      _
    %241 = vsyncpa [#allocation3], 1
    %242 = vsyncpa [#allocation6], 1
    %243 = vsyncpa [#allocation4], 1

</llo_original>
